<compile_context>
chip_gen: v5e
topology: v5e:2x2
jax: 0.10.0
libtpu: 0.0.40
codegen_flags: <defaults>
</compile_context>

<pallas_src>
import functools

import jax
import jax.numpy as jnp
from jax.experimental import pallas as pl
from jax.experimental.pallas import tpu as pltpu

LN_EPS = 1e-5


def _round_up(x, m):
    return (x + m - 1) // m * m


def _cdiv(a, b):
    return -(-a // b)


def _vmem_capacity_bytes():
    """Physical VMEM per TensorCore; conservative fallback = 64 MiB (v7x)."""
    try:
        info = pltpu.get_tpu_info()
        cap = getattr(info, "vmem_capacity_bytes", None)
        if cap:
            return int(cap)
    except Exception:
        pass
    return 64 * 1024 * 1024


def _vmem_usage(tm, th, dim_p, x_bytes, w_bytes, acc_in_out):
    """Rough working-set estimate (double-buffered inputs/outputs + scratch)."""
    use = 2 * tm * dim_p * x_bytes            # x rows (double buffer)
    use += 2 * tm * dim_p * x_bytes           # output rows (double buffer)
    use += 2 * dim_p * th * w_bytes           # w1 chunk
    use += 2 * th * dim_p * w_bytes           # w2 chunk
    use += 2 * th * 4                         # b1 chunk
    use += 3 * 2 * dim_p * 4                  # gamma / beta / b2
    use += tm * dim_p * w_bytes               # LN output scratch
    if not acc_in_out:
        use += tm * dim_p * 4                 # f32 accumulator scratch
    return use


def _ffn_kernel(x_ref, g_ref, b_ref, w1_ref, b1_ref, w2_ref, b2_ref, o_ref,
                xn_ref, *acc_scratch, dim_real, needs_mask, use_bf16):
    """Grid: (row_tiles, hidden_tiles). Hidden axis is the (arbitrary) reduction axis."""
    k = pl.program_id(1)
    # When the output dtype is f32 we accumulate straight into the resident output block.
    acc_ref = acc_scratch[0] if acc_scratch else o_ref

    @pl.when(k == 0)
    def _():
        # LayerNorm over the *real* feature lanes (padded lanes are zero + masked out).
        x = x_ref[...].astype(jnp.float32)                          # (tm, dim_p)
        inv_d = jnp.float32(1.0 / dim_real)
        mean = jnp.sum(x, axis=-1, keepdims=True) * inv_d
        if needs_mask:
            lane_idx = jax.lax.broadcasted_iota(jnp.int32, x.shape, 1)
            mask = (lane_idx < dim_real).astype(jnp.float32)
            centered = (x - mean) * mask
        else:
            centered = x - mean
        var = jnp.sum(centered * centered, axis=-1, keepdims=True) * inv_d
        xn = centered * jax.lax.rsqrt(var + jnp.float32(LN_EPS))
        xn = xn * g_ref[...].astype(jnp.float32) + b_ref[...].astype(jnp.float32)
        xn_ref[...] = xn.astype(xn_ref.dtype)                       # bf16 (or f32) for MXU
        acc_ref[...] = jnp.zeros_like(acc_ref)

    # Linear 1 over this hidden chunk: (tm, dim_p) @ (dim_p, th) -> f32
    h32 = jnp.dot(xn_ref[...], w1_ref[...], preferred_element_type=jnp.float32)

    if use_bf16:
        # Bias-add + tanh-approx GELU in bf16: polynomial on packed bf16 VALU, tanh on EUP.
        h = h32.astype(jnp.bfloat16) + b1_ref[...]
        inner = 0.7978845608028654 * (h + 0.044715 * (h * h * h))
        h = 0.5 * h * (1.0 + jnp.tanh(inner))
    else:
        # Exact erf GELU (matches nn.GELU default) in f32.
        h = h32 + b1_ref[...].astype(jnp.float32)
        h = 0.5 * h * (1.0 + jax.lax.erf(h * jnp.float32(0.7071067811865476)))
        h = h.astype(w2_ref.dtype)

    # TODO(synk): Dropout with p>0 in training mode would need pltpu.prng_*; the module
    # default p=0.0 (and eval mode) is the identity, which is what we implement.

    # Linear 2 partial: accumulate (tm, th) @ (th, dim_p) into f32.
    acc_ref[...] += jnp.dot(h, w2_ref[...], preferred_element_type=jnp.float32)

    @pl.when(k == pl.num_programs(1) - 1)
    def _():
        o_ref[...] = (acc_ref[...] + b2_ref[...].astype(jnp.float32)).astype(o_ref.dtype)


def make_feedforward(gamma, beta, w1, b1, w2, b2, *, use_bf16=True, tm=None, th=None):
    """Pads / casts parameters ONCE and returns a jitted `x -> y` callable.

    Weights are stored (in, out) = transpose of PyTorch nn.Linear.weight.
    """
    dim = int(gamma.shape[0])
    hidden = int(w1.shape[1])
    assert w1.shape == (dim, hidden) and w2.shape == (hidden, dim)
    assert b1.shape == (hidden,) and b2.shape == (dim,) and beta.shape == (dim,)

    capacity = _vmem_capacity_bytes()
    budget = int(capacity * 0.75)                       # headroom for compiler scratch
    big_vmem = capacity >= 100 * 1024 * 1024            # v5e / v6e (128 MiB)
    tm_def = tm if tm is not None else (512 if big_vmem else 256)
    th_req = th if th is not None else (1024 if big_vmem else 512)

    w_dtype = jnp.bfloat16 if use_bf16 else jnp.float32
    w_bytes = 2 if use_bf16 else 4

    # Lane-dense feature padding; 256 granularity keeps the 256-wide MXU contraction full.
    dim_p = _round_up(dim, 256) if dim > 128 else 128

    # Balanced hidden-axis chunking: th_eff * n_chunks covers hidden with minimal padding.
    hid_g = 256 if hidden > 128 else 128
    hid_base = _round_up(hidden, hid_g)
    th_cur = min(_round_up(th_req, hid_g), hid_base)
    while True:
        n_chunks = _cdiv(hid_base, th_cur)
        th_eff = _round_up(_cdiv(hid_base, n_chunks), hid_g)
        usage = _vmem_usage(tm_def, th_eff, dim_p, 4, w_bytes, acc_in_out=False)
        if usage <= budget or th_cur <= hid_g:
            break
        th_cur = max(hid_g, _round_up(th_cur // 2, hid_g))
    hid_p = th_eff * n_chunks

    # One-time parameter prep (padding + cast) — no per-call HBM pass over the weights.
    gamma_p = jnp.pad(gamma.astype(jnp.float32), (0, dim_p - dim)).reshape(1, dim_p)
    beta_p = jnp.pad(beta.astype(jnp.float32), (0, dim_p - dim)).reshape(1, dim_p)
    w1_p = jnp.pad(w1, ((0, dim_p - dim), (0, hid_p - hidden))).astype(w_dtype)
    b1_p = jnp.pad(b1, (0, hid_p - hidden)).astype(w_dtype).reshape(1, hid_p)
    w2_p = jnp.pad(w2, ((0, hid_p - hidden), (0, dim_p - dim))).astype(w_dtype)
    b2_p = jnp.pad(b2.astype(jnp.float32), (0, dim_p - dim)).reshape(1, dim_p)
    params = (gamma_p, beta_p, w1_p, b1_p, w2_p, b2_p)

    @jax.jit
    def apply(x):
        batch, seq, d = x.shape
        assert d == dim, f"expected last dim {dim}, got {d}"
        M = batch * seq
        x_bytes = jnp.dtype(x.dtype).itemsize
        acc_in_out = (x.dtype == jnp.float32)

        # Row tile: as large as fits the VMEM budget; multiple of 16 (f32/bf16 sublanes).
        tm_eff = min(tm_def, _round_up(M, 16))
        while tm_eff > 128 and _vmem_usage(tm_eff, th_eff, dim_p, x_bytes,
                                           w_bytes, acc_in_out) > budget:
            tm_eff = max(128, _round_up(tm_eff // 2, 16))
        # Megacore occupancy: keep >= 2 row tiles when there is enough work (v7x: 2 TCs).
        if tm_eff >= M and M >= 256:
            tm_eff = _round_up(_cdiv(_round_up(M, 16), 2), 16)
        M_p = _round_up(M, tm_eff)

        x2d = jnp.pad(x.reshape(M, d), ((0, M_p - M), (0, dim_p - d)))

        kernel = functools.partial(_ffn_kernel, dim_real=dim,
                                   needs_mask=(dim != dim_p), use_bf16=use_bf16)

        scratch = [pltpu.VMEM((tm_eff, dim_p), w_dtype)]   # LN output, reused across k
        if not acc_in_out:
            scratch.append(pltpu.VMEM((tm_eff, dim_p), jnp.float32))

        cost = pl.CostEstimate(
            flops=4 * M * dim * hidden + 10 * M * dim,
            transcendentals=M * hidden,
            bytes_accessed=(2 * M * dim * x_bytes
                            + (w1_p.size + w2_p.size) * w_bytes),
        )

        out2d = pl.pallas_call(
            kernel,
            out_shape=jax.ShapeDtypeStruct((M_p, dim_p), x.dtype),
            grid_spec=pltpu.PrefetchScalarGridSpec(
                num_scalar_prefetch=0,
                grid=(M_p // tm_eff, n_chunks),
                in_specs=[
                    pl.BlockSpec((tm_eff, dim_p), lambda i, k: (i, 0)),   # x rows
                    pl.BlockSpec((1, dim_p), lambda i, k: (0, 0)),        # gamma
                    pl.BlockSpec((1, dim_p), lambda i, k: (0, 0)),        # beta
                    pl.BlockSpec((dim_p, th_eff), lambda i, k: (0, k)),   # w1 chunk
                    pl.BlockSpec((1, th_eff), lambda i, k: (0, k)),       # b1 chunk
                    pl.BlockSpec((th_eff, dim_p), lambda i, k: (k, 0)),   # w2 chunk
                    pl.BlockSpec((1, dim_p), lambda i, k: (0, 0)),        # b2
                ],
                out_specs=pl.BlockSpec((tm_eff, dim_p), lambda i, k: (i, 0)),
                scratch_shapes=scratch,
            ),
            compiler_params=pltpu.CompilerParams(
                dimension_semantics=("parallel", "arbitrary"),
                vmem_limit_bytes=budget,
            ),
            cost_estimate=cost,
        )(x2d, *params)

        return out2d[:M, :dim].reshape(batch, seq, dim)

    return apply


def _reference(x, gamma, beta, w1, b1, w2, b2):
    xf = x.astype(jnp.float32)
    mean = jnp.mean(xf, axis=-1, keepdims=True)
    var = jnp.mean((xf - mean) ** 2, axis=-1, keepdims=True)
    xn = (xf - mean) / jnp.sqrt(var + LN_EPS) * gamma + beta
    h = xn @ w1 + b1
    h = 0.5 * h * (1.0 + jax.lax.erf(h / jnp.sqrt(2.0)))
    y = h @ w2 + b2
    return y.astype(x.dtype)


if __name__ == "__main__":
    # Small shapes implied by the forward: (batch, seq, dim) token stream.
    batch, seq, dim, hidden = 2, 8, 32, 64

    key = jax.random.PRNGKey(0)
    kx, kg, kb, kw1, kb1, kw2, kb2 = jax.random.split(key, 7)

    x = jax.random.normal(kx, (batch, seq, dim), dtype=jnp.float32)

    # Deterministic synthetic parameters (weights stored (in, out)).
    gamma = 1.0 + 0.1 * jax.random.normal(kg, (dim,), dtype=jnp.float32)
    beta = 0.1 * jax.random.normal(kb, (dim,), dtype=jnp.float32)
    w1 = jax.random.normal(kw1, (dim, hidden), dtype=jnp.float32) * (dim ** -0.5)
    b1 = 0.01 * jax.random.normal(kb1, (hidden,), dtype=jnp.float32)
    w2 = jax.random.normal(kw2, (hidden, dim), dtype=jnp.float32) * (hidden ** -0.5)
    b2 = 0.01 * jax.random.normal(kb2, (dim,), dtype=jnp.float32)

    ref = _reference(x, gamma, beta, w1, b1, w2, b2)

    # f32 exact path (erf GELU, f32 matmuls): tight match vs. f32 reference.
    ffn_f32 = make_feedforward(gamma, beta, w1, b1, w2, b2, use_bf16=False)
    out_f32 = jax.block_until_ready(ffn_f32(x))
    assert out_f32.shape == x.shape and out_f32.dtype == x.dtype
    assert jnp.allclose(out_f32, ref, atol=1e-4, rtol=1e-4), float(
        jnp.max(jnp.abs(out_f32 - ref)))

    # Default fast path: bf16 MXU operands + bf16 tanh-approx GELU, f32 accumulation.
    ffn_bf16 = make_feedforward(gamma, beta, w1, b1, w2, b2)
    out_bf16 = jax.block_until_ready(ffn_bf16(x))
    assert out_bf16.shape == x.shape and out_bf16.dtype == x.dtype
    assert jnp.allclose(out_bf16, ref, atol=8e-2, rtol=8e-2), float(
        jnp.max(jnp.abs(out_bf16 - ref)))

    print("KERNEL_OK")
</pallas_src>

<mosaic_0001>
module attributes {stable_mosaic.version = 11 : i64} {
  func.func @_ffn_kernel(%arg0: i32, %arg1: i32, %arg2: memref<16x128xf32, #tpu.memory_space<vmem>>, %arg3: memref<1x128xf32, #tpu.memory_space<vmem>>, %arg4: memref<1x128xf32, #tpu.memory_space<vmem>>, %arg5: memref<128x128xf32, #tpu.memory_space<vmem>>, %arg6: memref<1x128xf32, #tpu.memory_space<vmem>>, %arg7: memref<128x128xf32, #tpu.memory_space<vmem>>, %arg8: memref<1x128xf32, #tpu.memory_space<vmem>>, %arg9: memref<16x128xf32, #tpu.memory_space<vmem>>, %arg10: memref<16x128xf32, #tpu.memory_space<vmem>>) attributes {dimension_semantics = [#tpu.dimension_semantics<parallel>, #tpu.dimension_semantics<arbitrary>], iteration_bounds = array<i64: 1, 1>, scalar_prefetch = 0 : i64, scratch_operands = 1 : i64, tpu.core_type = #tpu.core_type<tc>, window_params = [{transform_indices = @transform_0, window_bounds = array<i64: 16, 128>}, {pipeline_mode = #tpu.pipeline_mode<synchronous>, transform_indices = @transform_1, window_bounds = array<i64: 1, 128>}, {pipeline_mode = #tpu.pipeline_mode<synchronous>, transform_indices = @transform_2, window_bounds = array<i64: 1, 128>}, {transform_indices = @transform_3, window_bounds = array<i64: 128, 128>}, {transform_indices = @transform_4, window_bounds = array<i64: 1, 128>}, {transform_indices = @transform_5, window_bounds = array<i64: 128, 128>}, {pipeline_mode = #tpu.pipeline_mode<synchronous>, transform_indices = @transform_6, window_bounds = array<i64: 1, 128>}, {transform_indices = @transform_7, window_bounds = array<i64: 16, 128>}]} {
    %c0_i32 = arith.constant 0 : i32
    %0 = arith.cmpi eq, %arg1, %c0_i32 : i32
    %1 = arith.extui %0 : i1 to i32
    %c0_i32_0 = arith.constant 0 : i32
    %2 = arith.cmpi ne, %1, %c0_i32_0 : i32
    scf.if %2 {
      %c0_18 = arith.constant 0 : index
      %c0_19 = arith.constant 0 : index
      %25 = vector.load %arg2[%c0_18, %c0_19] : memref<16x128xf32, #tpu.memory_space<vmem>>, vector<16x128xf32>
      %cst_20 = arith.constant dense<0.000000e+00> : vector<16xf32>
      %26 = vector.multi_reduction <add>, %25, %cst_20 [1] : vector<16x128xf32> to vector<16xf32>
      %27 = vector.shape_cast %26 : vector<16xf32> to vector<16x1xf32>
      %cst_21 = arith.constant 3.125000e-02 : f32
      %28 = vector.broadcast %cst_21 : f32 to vector<16x1xf32>
      %29 = arith.mulf %27, %28 : vector<16x1xf32>
      %30 = tpu.iota {dimensions = array<i32: 1>} : vector<16x128xi32>
      %c32_i32 = arith.constant 32 : i32
      %31 = vector.broadcast %c32_i32 : i32 to vector<16x128xi32>
      %32 = arith.cmpi slt, %30, %31 : vector<16x128xi32>
      %33 = arith.extui %32 : vector<16x128xi1> to vector<16x128xi32>
      %34 = arith.sitofp %33 : vector<16x128xi32> to vector<16x128xf32>
      %35 = vector.broadcast %29 : vector<16x1xf32> to vector<16x128xf32>
      %36 = arith.subf %25, %35 : vector<16x128xf32>
      %37 = arith.mulf %36, %34 : vector<16x128xf32>
      %38 = arith.mulf %37, %37 : vector<16x128xf32>
      %cst_22 = arith.constant dense<0.000000e+00> : vector<16xf32>
      %39 = vector.multi_reduction <add>, %38, %cst_22 [1] : vector<16x128xf32> to vector<16xf32>
      %40 = vector.shape_cast %39 : vector<16xf32> to vector<16x1xf32>
      %cst_23 = arith.constant 3.125000e-02 : f32
      %41 = vector.broadcast %cst_23 : f32 to vector<16x1xf32>
      %42 = arith.mulf %40, %41 : vector<16x1xf32>
      %cst_24 = arith.constant 9.99999974E-6 : f32
      %43 = vector.broadcast %cst_24 : f32 to vector<16x1xf32>
      %44 = arith.addf %42, %43 : vector<16x1xf32>
      %45 = math.rsqrt %44 : vector<16x1xf32>
      %46 = vector.broadcast %45 : vector<16x1xf32> to vector<16x128xf32>
      %47 = arith.mulf %37, %46 : vector<16x128xf32>
      %c0_25 = arith.constant 0 : index
      %c0_26 = arith.constant 0 : index
      %48 = vector.load %arg3[%c0_25, %c0_26] : memref<1x128xf32, #tpu.memory_space<vmem>>, vector<1x128xf32>
      %49 = vector.broadcast %48 : vector<1x128xf32> to vector<16x128xf32>
      %50 = arith.mulf %47, %49 : vector<16x128xf32>
      %c0_27 = arith.constant 0 : index
      %c0_28 = arith.constant 0 : index
      %51 = vector.load %arg4[%c0_27, %c0_28] : memref<1x128xf32, #tpu.memory_space<vmem>>, vector<1x128xf32>
      %52 = vector.broadcast %51 : vector<1x128xf32> to vector<16x128xf32>
      %53 = arith.addf %50, %52 : vector<16x128xf32>
      %c0_29 = arith.constant 0 : index
      %c0_30 = arith.constant 0 : index
      %54 = vector.load %arg10[%c0_29, %c0_30] : memref<16x128xf32, #tpu.memory_space<vmem>>, vector<16x128xf32>
      tpu.vector_store %arg10[%c0_29, %c0_30], %53 {strides = array<i32>} : memref<16x128xf32, #tpu.memory_space<vmem>>, vector<16x128xf32>,
      %cst_31 = arith.constant 0.000000e+00 : f32
      %55 = vector.broadcast %cst_31 : f32 to vector<16x128xf32>
      %c0_32 = arith.constant 0 : index
      %c0_33 = arith.constant 0 : index
      %56 = vector.load %arg9[%c0_32, %c0_33] : memref<16x128xf32, #tpu.memory_space<vmem>>, vector<16x128xf32>
      tpu.vector_store %arg9[%c0_32, %c0_33], %55 {strides = array<i32>} : memref<16x128xf32, #tpu.memory_space<vmem>>, vector<16x128xf32>,
    } else {
    }
    %c0 = arith.constant 0 : index
    %c0_1 = arith.constant 0 : index
    %3 = vector.load %arg10[%c0, %c0_1] : memref<16x128xf32, #tpu.memory_space<vmem>>, vector<16x128xf32>
    %c0_2 = arith.constant 0 : index
    %c0_3 = arith.constant 0 : index
    %4 = vector.load %arg5[%c0_2, %c0_3] : memref<128x128xf32, #tpu.memory_space<vmem>>, vector<128x128xf32>
    %cst = arith.constant dense<0.000000e+00> : vector<16x128xf32>
    %5 = tpu.matmul %3, %4, %cst {dimension_numbers = #tpu.dot_dimension_numbers<[1], [0], [0], [1], [0, 0, 1, 1], [], []>} : vector<16x128xf32>, vector<128x128xf32>, vector<16x128xf32> -> vector<16x128xf32>
    %c0_4 = arith.constant 0 : index
    %c0_5 = arith.constant 0 : index
    %6 = vector.load %arg6[%c0_4, %c0_5] : memref<1x128xf32, #tpu.memory_space<vmem>>, vector<1x128xf32>
    %7 = vector.broadcast %6 : vector<1x128xf32> to vector<16x128xf32>
    %8 = arith.addf %5, %7 : vector<16x128xf32>
    %cst_6 = arith.constant 5.000000e-01 : f32
    %9 = vector.broadcast %cst_6 : f32 to vector<16x128xf32>
    %10 = arith.mulf %9, %8 : vector<16x128xf32>
    %cst_7 = arith.constant 0.707106769 : f32
    %11 = vector.broadcast %cst_7 : f32 to vector<16x128xf32>
    %12 = arith.mulf %8, %11 : vector<16x128xf32>
    %13 = math.erf %12 : vector<16x128xf32>
    %cst_8 = arith.constant 1.000000e+00 : f32
    %14 = vector.broadcast %cst_8 : f32 to vector<16x128xf32>
    %15 = arith.addf %14, %13 : vector<16x128xf32>
    %16 = arith.mulf %10, %15 : vector<16x128xf32>
    %c0_9 = arith.constant 0 : index
    %c0_10 = arith.constant 0 : index
    %17 = vector.load %arg9[%c0_9, %c0_10] : memref<16x128xf32, #tpu.memory_space<vmem>>, vector<16x128xf32>
    %c0_11 = arith.constant 0 : index
    %c0_12 = arith.constant 0 : index
    %18 = vector.load %arg7[%c0_11, %c0_12] : memref<128x128xf32, #tpu.memory_space<vmem>>, vector<128x128xf32>
    %cst_13 = arith.constant dense<0.000000e+00> : vector<16x128xf32>
    %19 = tpu.matmul %16, %18, %cst_13 {dimension_numbers = #tpu.dot_dimension_numbers<[1], [0], [0], [1], [0, 0, 1, 1], [], []>} : vector<16x128xf32>, vector<128x128xf32>, vector<16x128xf32> -> vector<16x128xf32>
    %20 = arith.addf %17, %19 : vector<16x128xf32>
    %c0_14 = arith.constant 0 : index
    %c0_15 = arith.constant 0 : index
    %21 = vector.load %arg9[%c0_14, %c0_15] : memref<16x128xf32, #tpu.memory_space<vmem>>, vector<16x128xf32>
    tpu.vector_store %arg9[%c0_14, %c0_15], %20 {strides = array<i32>} : memref<16x128xf32, #tpu.memory_space<vmem>>, vector<16x128xf32>,
    %c0_i32_16 = arith.constant 0 : i32
    %22 = arith.cmpi eq, %arg1, %c0_i32_16 : i32
    %23 = arith.extui %22 : i1 to i32
    %c0_i32_17 = arith.constant 0 : i32
    %24 = arith.cmpi ne, %23, %c0_i32_17 : i32
    scf.if %24 {
      %c0_18 = arith.constant 0 : index
      %c0_19 = arith.constant 0 : index
      %25 = vector.load %arg9[%c0_18, %c0_19] : memref<16x128xf32, #tpu.memory_space<vmem>>, vector<16x128xf32>
      %c0_20 = arith.constant 0 : index
      %c0_21 = arith.constant 0 : index
      %26 = vector.load %arg8[%c0_20, %c0_21] : memref<1x128xf32, #tpu.memory_space<vmem>>, vector<1x128xf32>
      %27 = vector.broadcast %26 : vector<1x128xf32> to vector<16x128xf32>
      %28 = arith.addf %25, %27 : vector<16x128xf32>
      %c0_22 = arith.constant 0 : index
      %c0_23 = arith.constant 0 : index
      %29 = vector.load %arg9[%c0_22, %c0_23] : memref<16x128xf32, #tpu.memory_space<vmem>>, vector<16x128xf32>
      tpu.vector_store %arg9[%c0_22, %c0_23], %28 {strides = array<i32>} : memref<16x128xf32, #tpu.memory_space<vmem>>, vector<16x128xf32>,
    } else {
    }
    return
  }
  func.func @transform_0(%arg0: i32, %arg1: i32) -> (i32, i32) {
    %c0_i32 = arith.constant 0 : i32
    %c0_i32_0 = arith.constant 0 : i32
    return %arg0, %c0_i32 : i32, i32
  }
  func.func @transform_1(%arg0: i32, %arg1: i32) -> (i32, i32) {
    %c0_i32 = arith.constant 0 : i32
    %c0_i32_0 = arith.constant 0 : i32
    %c0_i32_1 = arith.constant 0 : i32
    return %c0_i32, %c0_i32_0 : i32, i32
  }
  func.func @transform_2(%arg0: i32, %arg1: i32) -> (i32, i32) {
    %c0_i32 = arith.constant 0 : i32
    %c0_i32_0 = arith.constant 0 : i32
    %c0_i32_1 = arith.constant 0 : i32
    return %c0_i32, %c0_i32_0 : i32, i32
  }
  func.func @transform_3(%arg0: i32, %arg1: i32) -> (i32, i32) {
    %c0_i32 = arith.constant 0 : i32
    %c0_i32_0 = arith.constant 0 : i32
    return %c0_i32, %arg1 : i32, i32
  }
  func.func @transform_4(%arg0: i32, %arg1: i32) -> (i32, i32) {
    %c0_i32 = arith.constant 0 : i32
    %c0_i32_0 = arith.constant 0 : i32
    return %c0_i32, %arg1 : i32, i32
  }
  func.func @transform_5(%arg0: i32, %arg1: i32) -> (i32, i32) {
    %c0_i32 = arith.constant 0 : i32
    %c0_i32_0 = arith.constant 0 : i32
    return %arg1, %c0_i32 : i32, i32
  }
  func.func @transform_6(%arg0: i32, %arg1: i32) -> (i32, i32) {
    %c0_i32 = arith.constant 0 : i32
    %c0_i32_0 = arith.constant 0 : i32
    %c0_i32_1 = arith.constant 0 : i32
    return %c0_i32, %c0_i32_0 : i32, i32
  }
  func.func @transform_7(%arg0: i32, %arg1: i32) -> (i32, i32) {
    %c0_i32 = arith.constant 0 : i32
    %c0_i32_0 = arith.constant 0 : i32
    return %arg0, %c0_i32 : i32, i32
  }
}

</mosaic_0001>

<llo_original>
// kernel: apply.1
$region0: #{apply.1}
  #allocation0 [shape = 'u32[]', space=smem, size = 0x4, offset = 0x4, fixed_abs, tag = 'smem constant byte address 0x4 - core index']
  #allocation1 [shape = 'u32[72,128]{1,0:T(1,128)}', space=vmem, size = 0x9000, scoped, tag = 'internal scratch']
  #allocation2 [shape = 'f32[16,128]{1,0:T(8,128)}', space=vmem, size = 0x2000, scoped, tag = 'scratch operand']
  %s0 = inlined_call_operand.vmem [shape: f32[16,128], index: 0, kind: input, shape index: {}]
  %s1 = inlined_call_operand.vmem [shape: f32[1,128], index: 1, kind: input, shape index: {}]
  %s2 = inlined_call_operand.vmem [shape: f32[1,128], index: 2, kind: input, shape index: {}]
  %s3 = inlined_call_operand.hbm [shape: f32[128,128], index: 3, kind: input, shape index: {}]
  %s4 = inlined_call_operand.vmem [shape: f32[1,128], index: 4, kind: input, shape index: {}]
  %s5 = inlined_call_operand.hbm [shape: f32[128,128], index: 5, kind: input, shape index: {}]
  %s6 = inlined_call_operand.vmem [shape: f32[1,128], index: 6, kind: input, shape index: {}]
  %s7 = inlined_call_operand.vmem [shape: f32[16,128], index: 7, kind: output, shape index: {}]
  %s8 = sld [smem:[#allocation0]]
  $region54: #{apply.1} parent=0
    _
  %s10 = ssub.s32 1, %s8
  %s11 = scalar_select 0, %s10, %s8
  $region1: #{apply.1} parent=0
    #allocation3 [shape = 'u8[65536]{0}', space=vmem, size = 0x10000, scoped, tag = 'input window, operand 3, single buffered']
    #allocation4 [shape = 's32[1]{0}', space=sflag, size = 0x4, scoped, tag = 'scoped memory for apply.1']
    #allocation5 [shape = 'u8[65536]{0}', space=vmem, size = 0x10000, scoped, tag = 'input window, operand 5, single buffered']
    #allocation6 [shape = 's32[1]{0}', space=sflag, size = 0x4, scoped, tag = 'scoped memory for apply.1']
    %12 = vsyncpa [#allocation4], 0
    %13 = vsyncpa [#allocation6], 0
    // Predicated region
    $region2: #{apply.1} parent=1 // pred_check
      _
    $region3: #{apply.1} parent=1 // pred_check_branch
      %15 = sbr.rel (0) target = $region5
    $region4: #{apply.1} parent=1 // pred_region
      _
    $region5: #{apply.1} parent=1 // pred_fallthru
      _
    // Predicated region
    $region6: #{apply.1} parent=1 // pred_check
      _
    $region7: #{apply.1} parent=1 // pred_check_branch
      %17 = sbr.rel (0) target = $region9
    $region8: #{apply.1} parent=1 // pred_region
      _
    $region9: #{apply.1} parent=1 // pred_fallthru
      _
    // Predicated region
    $region10: #{apply.1} parent=1 // pred_check
      _
    $region11: #{apply.1} parent=1 // pred_check_branch
      %19 = sbr.rel (0) target = $region13
    $region12: #{apply.1} parent=1 // pred_region
      _
    $region13: #{apply.1} parent=1 // pred_fallthru
      _
    // Predicated region
    $region14: #{apply.1} parent=1 // pred_check
      _
    $region15: #{apply.1} parent=1 // pred_check_branch
      %21 = sbr.rel (0) target = $region17
    $region16: #{apply.1} parent=1 // pred_region
      %23 = vsyncadd [#allocation4], 0
      %s24 = sshll.u32 %s3, 4
      %s25 = int_to_ptr.hbm [resolvable:$true] %s24
      %s26 = sshll.u32 [#allocation3], 4
      %s27 = int_to_ptr.vmem [resolvable:$true] %s26
      %32 = dma.hbm_to_vmem [thread:$0]  %s25, 2048, %s27, [#allocation4], 128, 128, 8
    $region17: #{apply.1} parent=1 // pred_fallthru
      _
    // Predicated region
    $region18: #{apply.1} parent=1 // pred_check
      _
    $region19: #{apply.1} parent=1 // pred_check_branch
      %34 = sbr.rel (0) target = $region21
    $region20: #{apply.1} parent=1 // pred_region
      _
    $region21: #{apply.1} parent=1 // pred_fallthru
      _
    // Predicated region
    $region22: #{apply.1} parent=1 // pred_check
      _
    $region23: #{apply.1} parent=1 // pred_check_branch
      %36 = sbr.rel (0) target = $region25
    $region24: #{apply.1} parent=1 // pred_region
      %38 = vsyncadd [#allocation6], 0
      %s39 = sshll.u32 %s5, 4
      %s40 = int_to_ptr.hbm [resolvable:$true] %s39
      %s41 = sshll.u32 [#allocation5], 4
      %s42 = int_to_ptr.vmem [resolvable:$true] %s41
      %47 = dma.hbm_to_vmem [thread:$0]  %s40, 2048, %s42, [#allocation6], 128, 128, 8
    $region25: #{apply.1} parent=1 // pred_fallthru
      _
    // Predicated region
    $region26: #{apply.1} parent=1 // pred_check
      _
    $region27: #{apply.1} parent=1 // pred_check_branch
      %49 = sbr.rel (0) target = $region29
    $region28: #{apply.1} parent=1 // pred_region
      _
    $region29: #{apply.1} parent=1 // pred_fallthru
      _
    // Predicated region
    $region30: #{apply.1} parent=1 // pred_check
      _
    $region31: #{apply.1} parent=1 // pred_check_branch
      %51 = sbr.rel (0) target = $region33
    $region32: #{apply.1} parent=1 // pred_region
      %53 = dma.done [#allocation4], 2048
    $region33: #{apply.1} parent=1 // pred_fallthru
      _
    // Predicated region
    $region34: #{apply.1} parent=1 // pred_check
      _
    $region35: #{apply.1} parent=1 // pred_check_branch
      %55 = sbr.rel (0) target = $region37
    $region36: #{apply.1} parent=1 // pred_region
      %57 = dma.done [#allocation6], 2048
    $region37: #{apply.1} parent=1 // pred_fallthru
      _
    %p58 = scmp.eq.s32.totalorder 0, 0
    // Predicated region
    $region38: #{apply.1} parent=1 // pred_check
      %p59 = pneg %p58
    $region39: #{apply.1} parent=1 // pred_check_branch
      %61 = sbr.rel (%p59) target = $region41
    $region40: #{apply.1} parent=1 // pred_region
      %v62 = vld [vmem:[%s0] sm:$0xff]
      %v63 = vld [vmem:[%s0 + $0x8] sm:$0xff]
      %64 = vadd.xlane.f32.xlu0 %v62
      %v65 = vpop.xlane.xlu0 %64
      %66 = vadd.xlane.f32.xlu0 %v63
      %v67 = vpop.xlane.xlu0 %66
      %v68 = vmul.f32 %v65, 0.03125
      %v69 = vmul.f32 %v67, 0.03125
      %v70 = vlaneseq
      %v71 = vand.u32 %v70, 127
      %vm72 = vcmp.lt.s32.totalorder %v71, 32
      %v73 = vsel %vm72, 1, 0
      %v74 = vcvt.s32.f32 %v73
      %v75 = vsub.f32 %v62, %v68
      %v76 = vsub.f32 %v63, %v69
      %v77 = vmul.f32 %v75, %v74
      %v78 = vmul.f32 %v76, %v74
      %v79 = vmul.f32 %v77, %v77
      %v80 = vmul.f32 %v78, %v78
      %81 = vadd.xlane.f32.xlu0 %v79
      %v82 = vpop.xlane.xlu0 %81
      %83 = vadd.xlane.f32.xlu0 %v80
      %v84 = vpop.xlane.xlu0 %83
      %v85 = vmul.f32 %v82, 0.03125
      %v86 = vmul.f32 %v84, 0.03125
      %v87 = vadd.f32 %v85, 1e-05
      %v88 = vadd.f32 %v86, 1e-05
      %v89 = vrsqrt.pop %v87
      %v90 = vmul.f32 %v89, %v87
      %v91 = vmul.f32 %v90, %v89
      %v92 = vmul.f32 0.5, %v91
      %v93 = vsub.f32 1.5, %v92
      %v94 = vmul.f32 %v89, %v93
      %vm95 = vweird.f32 %v87
      %vm96 = vweird.f32 %v89
      %vm97 = vmor %vm95, %vm96
      %v98 = vsel %vm97, %v89, %v94
      %v99 = vrsqrt.pop %v88
      %v100 = vmul.f32 %v99, %v88
      %v101 = vmul.f32 %v100, %v99
      %v102 = vmul.f32 0.5, %v101
      %v103 = vsub.f32 1.5, %v102
      %v104 = vmul.f32 %v99, %v103
      %vm105 = vweird.f32 %v88
      %vm106 = vweird.f32 %v99
      %vm107 = vmor %vm105, %vm106
      %v108 = vsel %vm107, %v99, %v104
      %v109 = vmul.f32 %v77, %v98
      %v110 = vmul.f32 %v78, %v108
      %v111 = vld [vmem:[%s1] sm:$0x1]
      %v113 = vperm.slane %v111, 0
      %v115 = vmul.f32 %v109, %v113
      %v116 = vmul.f32 %v110, %v113
      %v117 = vld [vmem:[%s2] sm:$0x1]
      %v119 = vperm.slane %v117, 0
      %v121 = vadd.f32 %v115, %v119
      %v122 = vadd.f32 %v116, %v119
      %123 = vst [vmem:[#allocation2] sm:$0xff] %v121
      %124 = vst [vmem:[#allocation2 + $0x8] sm:$0xff] %v122
      %125 = vst [vmem:[%s7] sm:$0xff] 0.0
      %126 = vst [vmem:[%s7 + $0x8] sm:$0xff] 0.0
    $region41: #{apply.1} parent=1 // pred_fallthru
      _
    %v127 = vld [vmem:[#allocation2] sm:$0xff]
    %v128 = vld [vmem:[#allocation2 + $0x8] sm:$0xff]
    %v129 = vld [vmem:[#allocation3] sm:$0xff]
    %v130 = vld [vmem:[#allocation3 + $0x8] sm:$0xff]
    %v131 = vld [vmem:[#allocation3 + $0x10] sm:$0xff]
    %v132 = vld [vmem:[#allocation3 + $0x18] sm:$0xff]
    %v133 = vld [vmem:[#allocation3 + $0x20] sm:$0xff]
    %v134 = vld [vmem:[#allocation3 + $0x28] sm:$0xff]
    %v135 = vld [vmem:[#allocation3 + $0x30] sm:$0xff]
    %v136 = vld [vmem:[#allocation3 + $0x38] sm:$0xff]
    %v137 = vld [vmem:[#allocation3 + $0x40] sm:$0xff]
    %v138 = vld [vmem:[#allocation3 + $0x48] sm:$0xff]
    %v139 = vld [vmem:[#allocation3 + $0x50] sm:$0xff]
    %v140 = vld [vmem:[#allocation3 + $0x58] sm:$0xff]
    %v141 = vld [vmem:[#allocation3 + $0x60] sm:$0xff]
    %v142 = vld [vmem:[#allocation3 + $0x68] sm:$0xff]
    %v143 = vld [vmem:[#allocation3 + $0x70] sm:$0xff]
    %v144 = vld [vmem:[#allocation3 + $0x78] sm:$0xff]
    %v145 = vld [vmem:[%s4] sm:$0x1]
    %v147 = vperm.slane %v145, 0
    %149 = vmatpush.msra.mxu0 %v144
    %150 = vmatpush.msra.mxu0 %v143
    %151 = vmatpush.msra.mxu0 %v142
    %152 = vmatpush.msra.mxu0 %v141
    %153 = vmatpush.msra.mxu0 %v140
    %154 = vmatpush.msra.mxu0 %v139
    %155 = vmatpush.msra.mxu0 %v138
    %156 = vmatpush.msra.mxu0 %v137
    %157 = vmatpush.msra.mxu0 %v136
    %158 = vmatpush.msra.mxu0 %v135
    %159 = vmatpush.msra.mxu0 %v134
    %160 = vmatpush.msra.mxu0 %v133
    %161 = vmatpush.msra.mxu0 %v132
    %162 = vmatpush.msra.mxu0 %v131
    %163 = vmatpush.msra.mxu0 %v130
    %164 = vmatpush.msra.mxu0 %v129
    %165 = vmatmul.f32.gmra.mxu0 %v127
    %v166 = vpop.f32.mrf.mxu0
    %v167 = vadd.f32 %v147, %v166
    %168 = vmatmul.f32.gmra.mxu0 %v128
    %v169 = vpop.f32.mrf.mxu0
    %v170 = vadd.f32 %v147, %v169
    %171 = vdwg.mxu0
    %v172 = vmul.f32 %v167, 0.5
    %v173 = vmul.f32 %v170, 0.5
    %v174 = vmul.f32 %v167, 0.70710677
    %v175 = vmul.f32 %v170, 0.70710677
    %v176 = vmul.f32 %v174, %v174
    %v177 = vmin.f32 16.0, %v176
    %v178 = vmul.f32 %v177, 2.1237322e-06
    %v179 = vadd.f32 %v178, 0.00028619796
    %v180 = vmul.f32 %v177, %v179
    %v181 = vadd.f32 %v180, 0.0036580483
    %v182 = vmul.f32 %v177, %v181
    %v183 = vadd.f32 %v182, 0.05243302
    %v184 = vmul.f32 %v177, %v183
    %v185 = vadd.f32 %v184, 0.18741608
    %v186 = vmul.f32 %v177, %v185
    %v187 = vadd.f32 %v186, 1.1283791
    %v188 = vmul.f32 %v174, %v187
    %v189 = vmul.f32 %v177, 3.8918573e-05
    %v190 = vadd.f32 %v189, 0.001143296
    %v191 = vmul.f32 %v177, %v190
    %v192 = vadd.f32 %v191, 0.014752088
    %v193 = vmul.f32 %v177, %v192
    %v194 = vadd.f32 %v193, 0.112945676
    %v195 = vmul.f32 %v177, %v194
    %v196 = vadd.f32 %v195, 0.4994258
    %v197 = vmul.f32 %v177, %v196
    %v198 = vadd.f32 %v197, 1.0
    %v199 = vrcp.pop %v198
    %v200 = vmul.f32 %v198, %v199
    %v201 = vsub.f32 1.0, %v200
    %v202 = vmul.f32 %v199, %v201
    %v203 = vadd.f32 %v199, %v202
    %vm204 = vweird.f32 %v198
    %vm205 = vweird.f32 %v199
    %vm206 = vmor %vm204, %vm205
    %v207 = vsel %vm206, %v199, %v203
    %v208 = vand.u32 2147483647, %v198
    %vm209 = vcmp.eq.f32.partialorder %v208, 8.507059e+37
    %v210 = vand.u32 %v198, 2147483648
    %v211 = vor.u32 1.1754944e-38, %v210
    %v212 = vsel %vm209, %v211, %v207
    %v213 = vmul.f32 %v188, %v212
    %v214 = vmin.f32 %v213, 1.0
    %v215 = vmax.f32 %v214, -1.0
    %v216 = vmul.f32 %v175, %v175
    %v217 = vmin.f32 16.0, %v216
    %v218 = vmul.f32 %v217, 2.1237322e-06
    %v219 = vadd.f32 %v218, 0.00028619796
    %v220 = vmul.f32 %v217, %v219
    %v221 = vadd.f32 %v220, 0.0036580483
    %v222 = vmul.f32 %v217, %v221
    %v223 = vadd.f32 %v222, 0.05243302
    %v224 = vmul.f32 %v217, %v223
    %v225 = vadd.f32 %v224, 0.18741608
    %v226 = vmul.f32 %v217, %v225
    %v227 = vadd.f32 %v226, 1.1283791
    %v228 = vmul.f32 %v175, %v227
    %v229 = vmul.f32 %v217, 3.8918573e-05
    %v230 = vadd.f32 %v229, 0.001143296
    %v231 = vmul.f32 %v217, %v230
    %v232 = vadd.f32 %v231, 0.014752088
    %v233 = vmul.f32 %v217, %v232
    %v234 = vadd.f32 %v233, 0.112945676
    %v235 = vmul.f32 %v217, %v234
    %v236 = vadd.f32 %v235, 0.4994258
    %v237 = vmul.f32 %v217, %v236
    %v238 = vadd.f32 %v237, 1.0
    %v239 = vrcp.pop %v238
    %v240 = vmul.f32 %v238, %v239
    %v241 = vsub.f32 1.0, %v240
    %v242 = vmul.f32 %v239, %v241
    %v243 = vadd.f32 %v239, %v242
    %vm244 = vweird.f32 %v238
    %vm245 = vweird.f32 %v239
    %vm246 = vmor %vm244, %vm245
    %v247 = vsel %vm246, %v239, %v243
    %v248 = vand.u32 2147483647, %v238
    %vm249 = vcmp.eq.f32.partialorder %v248, 8.507059e+37
    %v250 = vand.u32 %v238, 2147483648
    %v251 = vor.u32 1.1754944e-38, %v250
    %v252 = vsel %vm249, %v251, %v247
    %v253 = vmul.f32 %v228, %v252
    %v254 = vmin.f32 %v253, 1.0
    %v255 = vmax.f32 %v254, -1.0
    %v256 = vadd.f32 %v215, 1.0
    %v257 = vadd.f32 %v255, 1.0
    %v258 = vmul.f32 %v172, %v256
    %v259 = vmul.f32 %v173, %v257
    %v260 = vld [vmem:[%s7] sm:$0xff]
    %v261 = vld [vmem:[%s7 + $0x8] sm:$0xff]
    %v262 = vld [vmem:[#allocation5] sm:$0xff]
    %v263 = vld [vmem:[#allocation5 + $0x8] sm:$0xff]
    %v264 = vld [vmem:[#allocation5 + $0x10] sm:$0xff]
    %v265 = vld [vmem:[#allocation5 + $0x18] sm:$0xff]
    %v266 = vld [vmem:[#allocation5 + $0x20] sm:$0xff]
    %v267 = vld [vmem:[#allocation5 + $0x28] sm:$0xff]
    %v268 = vld [vmem:[#allocation5 + $0x30] sm:$0xff]
    %v269 = vld [vmem:[#allocation5 + $0x38] sm:$0xff]
    %v270 = vld [vmem:[#allocation5 + $0x40] sm:$0xff]
    %v271 = vld [vmem:[#allocation5 + $0x48] sm:$0xff]
    %v272 = vld [vmem:[#allocation5 + $0x50] sm:$0xff]
    %v273 = vld [vmem:[#allocation5 + $0x58] sm:$0xff]
    %v274 = vld [vmem:[#allocation5 + $0x60] sm:$0xff]
    %v275 = vld [vmem:[#allocation5 + $0x68] sm:$0xff]
    %v276 = vld [vmem:[#allocation5 + $0x70] sm:$0xff]
    %v277 = vld [vmem:[#allocation5 + $0x78] sm:$0xff]
    %278 = vmatpush.msra.mxu0 %v277
    %279 = vmatpush.msra.mxu0 %v276
    %280 = vmatpush.msra.mxu0 %v275
    %281 = vmatpush.msra.mxu0 %v274
    %282 = vmatpush.msra.mxu0 %v273
    %283 = vmatpush.msra.mxu0 %v272
    %284 = vmatpush.msra.mxu0 %v271
    %285 = vmatpush.msra.mxu0 %v270
    %286 = vmatpush.msra.mxu0 %v269
    %287 = vmatpush.msra.mxu0 %v268
    %288 = vmatpush.msra.mxu0 %v267
    %289 = vmatpush.msra.mxu0 %v266
    %290 = vmatpush.msra.mxu0 %v265
    %291 = vmatpush.msra.mxu0 %v264
    %292 = vmatpush.msra.mxu0 %v263
    %293 = vmatpush.msra.mxu0 %v262
    %294 = vmatmul.f32.gmra.mxu0 %v258
    %v295 = vpop.f32.mrf.mxu0
    %v296 = vadd.f32 0.0, %v295
    %297 = vmatmul.f32.gmra.mxu0 %v259
    %v298 = vpop.f32.mrf.mxu0
    %v299 = vadd.f32 0.0, %v298
    %300 = vdwg.mxu0
    %v301 = vadd.f32 %v260, %v296
    %v302 = vadd.f32 %v261, %v299
    %303 = vst [vmem:[%s7] sm:$0xff] %v301
    %304 = vst [vmem:[%s7 + $0x8] sm:$0xff] %v302
    // Predicated region
    $region42: #{apply.1} parent=1 // pred_check
      %p305 = pneg %p58
    $region43: #{apply.1} parent=1 // pred_check_branch
      %307 = sbr.rel (%p305) target = $region45
    $region44: #{apply.1} parent=1 // pred_region
      %v308 = vld [vmem:[%s7] sm:$0xff]
      %v309 = vld [vmem:[%s7 + $0x8] sm:$0xff]
      %v310 = vld [vmem:[%s6] sm:$0x1]
      %v312 = vperm.slane %v310, 0
      %v314 = vadd.f32 %v308, %v312
      %v315 = vadd.f32 %v309, %v312
      %316 = vst [vmem:[%s7] sm:$0xff] %v314
      %317 = vst [vmem:[%s7 + $0x8] sm:$0xff] %v315
    $region45: #{apply.1} parent=1 // pred_fallthru
      _
    // Predicated region
    $region46: #{apply.1} parent=1 // pred_check
      _
    $region47: #{apply.1} parent=1 // pred_check_branch
      %319 = sbr.rel (0) target = $region49
    $region48: #{apply.1} parent=1 // pred_region
      _
    $region49: #{apply.1} parent=1 // pred_fallthru
      _
    // Predicated region
    $region50: #{apply.1} parent=1 // pred_check
      _
    $region51: #{apply.1} parent=1 // pred_check_branch
      %321 = sbr.rel (0) target = $region53
    $region52: #{apply.1} parent=1 // pred_region
      _
    $region53: #{apply.1} parent=1 // pred_fallthru
      _
    %322 = vsyncpa [#allocation4], 1
    %323 = vsyncpa [#allocation6], 1

</llo_original>
